<compile_context>
chip_gen: v7x
topology: tpu7x:2x2x1
jax: 0.10.0
libtpu: 0.0.40
codegen_flags: <defaults>
</compile_context>

<pallas_src>
import functools

import jax
import jax.numpy as jnp
from jax.experimental import pallas as pl
from jax.experimental.pallas import tpu as pltpu

EPS = 1e-6
LANE = 128


def _round_up(n, m):
    return (n + m - 1) // m * m


def _pick_batch_tile(B):
    # Prefer a 64-row f32 tile (multiple of the 8-sublane min tile); fall back
    # to smaller divisors.  TODO(synk): mask partial tiles to support ragged B.
    for tb in (64, 32, 16, 8):
        if B % tb == 0:
            return tb
    raise ValueError("batch size must be a multiple of 8")


# ------------- pass 1: norm.fit — per-feature mean / var over the batch -------------
def _stats_kernel(x_ref, mean_ref, var_ref, *, n_rows):
    i = pl.program_id(0)

    @pl.when(i == 0)
    def _():
        mean_ref[...] = jnp.zeros_like(mean_ref)
        var_ref[...] = jnp.zeros_like(var_ref)

    x = x_ref[...].astype(jnp.float32)                        # [TB, Dp]
    mean_ref[...] += jnp.sum(x, axis=0, keepdims=True)        # running sum
    var_ref[...] += jnp.sum(x * x, axis=0, keepdims=True)     # running sum of squares

    @pl.when(i == pl.num_programs(0) - 1)
    def _():
        inv_n = jnp.float32(1.0 / n_rows)
        mean = mean_ref[...] * inv_n
        var = jnp.maximum(var_ref[...] * inv_n - mean * mean, 0.0)  # population var
        mean_ref[...] = mean
        var_ref[...] = var


# ------------- pass 2: transform -> net (MLP) -> inverse_transform -------------
def _mlp_kernel(mean_ref, var_ref, x_ref, w1_ref, b1_ref, w2_ref, b2_ref, o_ref):
    x = x_ref[...].astype(jnp.float32)                        # [TB, Dp]
    mean = mean_ref[...]                                      # [1, Dp]  (f32)
    var = var_ref[...]                                        # [1, Dp]  (f32)

    inv_std = jax.lax.rsqrt(var + EPS)                        # EUP slot, ~free
    std = (var + EPS) * inv_std                               # == sqrt(var + eps)

    # norm.transform — f32 elementwise on the VPU.
    xn = (x - mean) * inv_std

    # net: Linear -> ReLU -> Linear.  bf16 MXU inputs, f32 accumulation.
    h = jnp.dot(xn.astype(jnp.bfloat16), w1_ref[...],
                preferred_element_type=jnp.float32) + b1_ref[...]
    h = jnp.maximum(h, 0.0)
    y = jnp.dot(h.astype(jnp.bfloat16), w2_ref[...],
                preferred_element_type=jnp.float32) + b2_ref[...]

    # norm.inverse_transform — f32 elementwise.
    o_ref[...] = (y * std + mean).astype(o_ref.dtype)


def normnet_forward(x, w1, b1, w2, b2):
    B, D = x.shape
    H = w1.shape[1]
    Dp = _round_up(D, LANE)
    Hp = _round_up(H, LANE)
    TB = _pick_batch_tile(B)
    grid = (B // TB,)

    # Lane-pad features with zeros; pre-cast weights to bf16 (halves the
    # VMEM-resident weight footprint and HBM traffic).  Padded feature columns
    # are all-zero end to end, so they never perturb the real outputs.
    xp = jnp.pad(x, ((0, 0), (0, Dp - D)))
    w1p = jnp.pad(w1, ((0, Dp - D), (0, Hp - H))).astype(jnp.bfloat16)
    b1p = jnp.pad(b1, ((0, 0), (0, Hp - H))).astype(jnp.float32)
    w2p = jnp.pad(w2, ((0, Hp - H), (0, Dp - D))).astype(jnp.bfloat16)
    b2p = jnp.pad(b2, ((0, 0), (0, Dp - D))).astype(jnp.float32)

    stat_spec = pl.BlockSpec((1, Dp), lambda i: (0, 0))       # VMEM-resident across grid
    x_spec = pl.BlockSpec((TB, Dp), lambda i: (i, 0))

    # -------- pass 1: fit (reduction axis -> "arbitrary") --------
    mean, var = pl.pallas_call(
        functools.partial(_stats_kernel, n_rows=B),
        out_shape=(jax.ShapeDtypeStruct((1, Dp), jnp.float32),
                   jax.ShapeDtypeStruct((1, Dp), jnp.float32)),
        grid=grid,
        in_specs=[x_spec],
        out_specs=(stat_spec, stat_spec),
        compiler_params=pltpu.CompilerParams(
            dimension_semantics=("arbitrary",),
            vmem_limit_bytes=32 * 1024 * 1024),
    )(xp)

    # -------- pass 2: transform + MLP + inverse (batch axis -> "parallel") --------
    out_p = pl.pallas_call(
        _mlp_kernel,
        out_shape=jax.ShapeDtypeStruct((B, Dp), x.dtype),
        grid=grid,
        in_specs=[stat_spec,                                   # mean
                  stat_spec,                                   # var
                  x_spec,                                      # x tile (pipelined)
                  pl.BlockSpec((Dp, Hp), lambda i: (0, 0)),    # w1 (VMEM-resident)
                  pl.BlockSpec((1, Hp), lambda i: (0, 0)),     # b1
                  pl.BlockSpec((Hp, Dp), lambda i: (0, 0)),    # w2 (VMEM-resident)
                  pl.BlockSpec((1, Dp), lambda i: (0, 0))],    # b2
        out_specs=pl.BlockSpec((TB, Dp), lambda i: (i, 0)),    # lane-dense stores
        compiler_params=pltpu.CompilerParams(
            dimension_semantics=("parallel",),
            vmem_limit_bytes=32 * 1024 * 1024),
    )(mean, var, xp, w1p, b1p, w2p, b2p)

    return out_p[:, :D]


def init_params(key, d_in, d_hidden):
    # PyTorch nn.Linear default init: U(-1/sqrt(fan_in), 1/sqrt(fan_in)).
    k1, k2, k3, k4 = jax.random.split(key, 4)
    lim1 = 1.0 / jnp.sqrt(d_in)
    lim2 = 1.0 / jnp.sqrt(d_hidden)
    w1 = jax.random.uniform(k1, (d_in, d_hidden), jnp.float32, -lim1, lim1)   # [in, out]
    b1 = jax.random.uniform(k2, (1, d_hidden), jnp.float32, -lim1, lim1)
    w2 = jax.random.uniform(k3, (d_hidden, d_in), jnp.float32, -lim2, lim2)   # [in, out]
    b2 = jax.random.uniform(k4, (1, d_in), jnp.float32, -lim2, lim2)
    return w1, b1, w2, b2


def reference_forward_bf16(x, w1, b1, w2, b2):
    # Pure-JAX reference with the SAME numerics as the kernel (bf16 MXU inputs,
    # f32 accumulation, f32 stats) for a tight correctness gate.
    mean = jnp.mean(x, axis=0, keepdims=True)
    var = jnp.mean((x - mean) ** 2, axis=0, keepdims=True)
    inv_std = jax.lax.rsqrt(var + EPS)
    std = (var + EPS) * inv_std
    xn = (x - mean) * inv_std
    h = jnp.dot(xn.astype(jnp.bfloat16), w1.astype(jnp.bfloat16),
                preferred_element_type=jnp.float32) + b1
    h = jnp.maximum(h, 0.0)
    y = jnp.dot(h.astype(jnp.bfloat16), w2.astype(jnp.bfloat16),
                preferred_element_type=jnp.float32) + b2
    return y * std + mean


def reference_forward_f32(x, w1, b1, w2, b2):
    # Full-f32 reference of the module semantics (loose sanity gate).
    mean = jnp.mean(x, axis=0, keepdims=True)
    var = jnp.mean((x - mean) ** 2, axis=0, keepdims=True)
    std = jnp.sqrt(var + EPS)
    xn = (x - mean) / std
    h = jnp.maximum(xn @ w1 + b1, 0.0)
    y = h @ w2 + b2
    return y * std + mean


if __name__ == "__main__":
    key = jax.random.PRNGKey(0)
    kx, kp = jax.random.split(key)

    B, D, H = 256, 32, 64
    x = jax.random.normal(kx, (B, D), jnp.float32) * 3.0 + 1.5
    w1, b1, w2, b2 = init_params(kp, D, H)

    out = jax.block_until_ready(normnet_forward(x, w1, b1, w2, b2))
    assert out.shape == (B, D)

    ref = reference_forward_bf16(x, w1, b1, w2, b2)
    assert jnp.allclose(out, ref, atol=5e-3, rtol=5e-3), \
        "mismatch vs bf16-matmul JAX reference"

    ref32 = reference_forward_f32(x, w1, b1, w2, b2)
    assert jnp.allclose(out, ref32, atol=2e-1, rtol=1e-1), \
        "mismatch vs f32 JAX reference"

    print("KERNEL_OK")
</pallas_src>

<mosaic_0001>
module attributes {stable_mosaic.version = 11 : i64} {
  func.func @_stats_kernel(%arg0: i32, %arg1: memref<64x128xf32, #tpu.memory_space<vmem>>, %arg2: memref<1x128xf32, #tpu.memory_space<vmem>>, %arg3: memref<1x128xf32, #tpu.memory_space<vmem>>) attributes {dimension_semantics = [#tpu.dimension_semantics<arbitrary>], iteration_bounds = array<i64: 4>, scalar_prefetch = 0 : i64, scratch_operands = 0 : i64, tpu.core_type = #tpu.core_type<tc>, window_params = [{transform_indices = @transform_0, window_bounds = array<i64: 64, 128>}, {pipeline_mode = #tpu.pipeline_mode<synchronous>, transform_indices = @transform_1, window_bounds = array<i64: 1, 128>}, {pipeline_mode = #tpu.pipeline_mode<synchronous>, transform_indices = @transform_2, window_bounds = array<i64: 1, 128>}]} {
    %c0_i32 = arith.constant 0 : i32
    %0 = arith.cmpi eq, %arg0, %c0_i32 : i32
    %1 = arith.extui %0 : i1 to i32
    %c0_i32_0 = arith.constant 0 : i32
    %2 = arith.cmpi ne, %1, %c0_i32_0 : i32
    scf.if %2 {
      %cst_12 = arith.constant 0.000000e+00 : f32
      %18 = vector.broadcast %cst_12 : f32 to vector<1x128xf32>
      %c0_13 = arith.constant 0 : index
      %c0_14 = arith.constant 0 : index
      %19 = vector.load %arg2[%c0_13, %c0_14] : memref<1x128xf32, #tpu.memory_space<vmem>>, vector<1x128xf32>
      tpu.vector_store %arg2[%c0_13, %c0_14], %18 {strides = array<i32>} : memref<1x128xf32, #tpu.memory_space<vmem>>, vector<1x128xf32>,
      %cst_15 = arith.constant 0.000000e+00 : f32
      %20 = vector.broadcast %cst_15 : f32 to vector<1x128xf32>
      %c0_16 = arith.constant 0 : index
      %c0_17 = arith.constant 0 : index
      %21 = vector.load %arg3[%c0_16, %c0_17] : memref<1x128xf32, #tpu.memory_space<vmem>>, vector<1x128xf32>
      tpu.vector_store %arg3[%c0_16, %c0_17], %20 {strides = array<i32>} : memref<1x128xf32, #tpu.memory_space<vmem>>, vector<1x128xf32>,
    } else {
    }
    %c0 = arith.constant 0 : index
    %c0_1 = arith.constant 0 : index
    %3 = vector.load %arg1[%c0, %c0_1] : memref<64x128xf32, #tpu.memory_space<vmem>>, vector<64x128xf32>
    %c0_2 = arith.constant 0 : index
    %c0_3 = arith.constant 0 : index
    %4 = vector.load %arg2[%c0_2, %c0_3] : memref<1x128xf32, #tpu.memory_space<vmem>>, vector<1x128xf32>
    %cst = arith.constant dense<0.000000e+00> : vector<128xf32>
    %5 = vector.multi_reduction <add>, %3, %cst [0] : vector<64x128xf32> to vector<128xf32>
    %6 = vector.shape_cast %5 : vector<128xf32> to vector<1x128xf32>
    %7 = arith.addf %4, %6 : vector<1x128xf32>
    %c0_4 = arith.constant 0 : index
    %c0_5 = arith.constant 0 : index
    %8 = vector.load %arg2[%c0_4, %c0_5] : memref<1x128xf32, #tpu.memory_space<vmem>>, vector<1x128xf32>
    tpu.vector_store %arg2[%c0_4, %c0_5], %7 {strides = array<i32>} : memref<1x128xf32, #tpu.memory_space<vmem>>, vector<1x128xf32>,
    %c0_6 = arith.constant 0 : index
    %c0_7 = arith.constant 0 : index
    %9 = vector.load %arg3[%c0_6, %c0_7] : memref<1x128xf32, #tpu.memory_space<vmem>>, vector<1x128xf32>
    %10 = arith.mulf %3, %3 : vector<64x128xf32>
    %cst_8 = arith.constant dense<0.000000e+00> : vector<128xf32>
    %11 = vector.multi_reduction <add>, %10, %cst_8 [0] : vector<64x128xf32> to vector<128xf32>
    %12 = vector.shape_cast %11 : vector<128xf32> to vector<1x128xf32>
    %13 = arith.addf %9, %12 : vector<1x128xf32>
    %c0_9 = arith.constant 0 : index
    %c0_10 = arith.constant 0 : index
    %14 = vector.load %arg3[%c0_9, %c0_10] : memref<1x128xf32, #tpu.memory_space<vmem>>, vector<1x128xf32>
    tpu.vector_store %arg3[%c0_9, %c0_10], %13 {strides = array<i32>} : memref<1x128xf32, #tpu.memory_space<vmem>>, vector<1x128xf32>,
    %c3_i32 = arith.constant 3 : i32
    %15 = arith.cmpi eq, %arg0, %c3_i32 : i32
    %16 = arith.extui %15 : i1 to i32
    %c0_i32_11 = arith.constant 0 : i32
    %17 = arith.cmpi ne, %16, %c0_i32_11 : i32
    scf.if %17 {
      %c0_12 = arith.constant 0 : index
      %c0_13 = arith.constant 0 : index
      %18 = vector.load %arg2[%c0_12, %c0_13] : memref<1x128xf32, #tpu.memory_space<vmem>>, vector<1x128xf32>
      %cst_14 = arith.constant 3.906250e-03 : f32
      %19 = vector.broadcast %cst_14 : f32 to vector<1x128xf32>
      %20 = arith.mulf %18, %19 : vector<1x128xf32>
      %c0_15 = arith.constant 0 : index
      %c0_16 = arith.constant 0 : index
      %21 = vector.load %arg3[%c0_15, %c0_16] : memref<1x128xf32, #tpu.memory_space<vmem>>, vector<1x128xf32>
      %cst_17 = arith.constant 3.906250e-03 : f32
      %22 = vector.broadcast %cst_17 : f32 to vector<1x128xf32>
      %23 = arith.mulf %21, %22 : vector<1x128xf32>
      %24 = arith.mulf %20, %20 : vector<1x128xf32>
      %25 = arith.subf %23, %24 : vector<1x128xf32>
      %cst_18 = arith.constant 0.000000e+00 : f32
      %26 = vector.broadcast %cst_18 : f32 to vector<1x128xf32>
      %27 = arith.maximumf %25, %26 : vector<1x128xf32>
      %c0_19 = arith.constant 0 : index
      %c0_20 = arith.constant 0 : index
      %28 = vector.load %arg2[%c0_19, %c0_20] : memref<1x128xf32, #tpu.memory_space<vmem>>, vector<1x128xf32>
      tpu.vector_store %arg2[%c0_19, %c0_20], %20 {strides = array<i32>} : memref<1x128xf32, #tpu.memory_space<vmem>>, vector<1x128xf32>,
      %c0_21 = arith.constant 0 : index
      %c0_22 = arith.constant 0 : index
      %29 = vector.load %arg3[%c0_21, %c0_22] : memref<1x128xf32, #tpu.memory_space<vmem>>, vector<1x128xf32>
      tpu.vector_store %arg3[%c0_21, %c0_22], %27 {strides = array<i32>} : memref<1x128xf32, #tpu.memory_space<vmem>>, vector<1x128xf32>,
    } else {
    }
    return
  }
  func.func @transform_0(%arg0: i32) -> (i32, i32) {
    %c0_i32 = arith.constant 0 : i32
    %c0_i32_0 = arith.constant 0 : i32
    return %arg0, %c0_i32 : i32, i32
  }
  func.func @transform_1(%arg0: i32) -> (i32, i32) {
    %c0_i32 = arith.constant 0 : i32
    %c0_i32_0 = arith.constant 0 : i32
    %c0_i32_1 = arith.constant 0 : i32
    return %c0_i32, %c0_i32_0 : i32, i32
  }
  func.func @transform_2(%arg0: i32) -> (i32, i32) {
    %c0_i32 = arith.constant 0 : i32
    %c0_i32_0 = arith.constant 0 : i32
    %c0_i32_1 = arith.constant 0 : i32
    return %c0_i32, %c0_i32_0 : i32, i32
  }
}

</mosaic_0001>

<llo_original>
// kernel: tpu_custom_call.1
$region0: #{tpu_custom_call.1}
  #allocation0 [shape = 'u32[]', space=smem, size = 0x4, offset = 0x4, fixed_abs, tag = 'smem constant byte address 0x4 - core index']
  #allocation1 [shape = 'u32[144,128]{1,0:T(1,128)}', space=vmem, size = 0x12000, scoped, tag = 'internal scratch']
  %s0 = inlined_call_operand.hbm [shape: f32[256,128], index: 0, kind: input, shape index: {}]
  %s1 = inlined_call_operand.hbm [shape: f32[1,128], index: 1, kind: output, shape index: {0}]
  %s2 = inlined_call_operand.hbm [shape: f32[1,128], index: 2, kind: output, shape index: {1}]
  %3 = xla_tuple %s1, %s2
  %s4 = sld [smem:[#allocation0]]
  $region57: #{tpu_custom_call.1} parent=0
    _
  %s6 = ssub.s32 1, %s4
  %s7 = scalar_select 0, %s6, %s4
  $region1: #{tpu_custom_call.1} parent=0
    #allocation2 [shape = 'u8[65536]{0}', space=vmem, size = 0x10000, scoped, tag = 'input window, operand 0']
    #allocation3 [shape = 's32[2]{0}', space=sflag, size = 0x8, scoped, tag = 'scoped memory for tpu_custom_call.1']
    #allocation4 [shape = 's32[2]{0}', space=sflag, size = 0x8, scoped, tag = 'scoped memory for tpu_custom_call.1']
    #allocation5 [shape = 'u8[512]{0}', space=vmem, size = 0x400, scoped, tag = 'output window, operand 0, single buffered']
    #allocation6 [shape = 'u8[512]{0}', space=vmem, size = 0x400, scoped, tag = 'output window, operand 1, single buffered']
    #allocation7 [shape = 's32[1]{0}', space=sflag, size = 0x4, scoped, tag = 'scoped memory for tpu_custom_call.1']
    %8 = vsyncpa [#allocation3], 0
    %s9 = scalar_lea.sflag [#allocation3], 1
    %10 = vsyncpa %s9, 0
    %11 = vsyncpa [#allocation4], 0
    %12 = vsyncpa [#allocation7], 0
    loop: start=0, step=1, limit=6
    $region2: #{tpu_custom_call.1} parent=1 // loop_pre_header
      _
    $region3: #{tpu_custom_call.1} parent=1 // loop_header
      %s14 = sphi 0, %s18
      %p15 = scmp.ge.s32.totalorder %s14, 6
      %s24 = sphi 0, %s26
      %s27 = sphi 0, %s24
      %s28 = sphi 0, %s27
      %s44 = sphi 0, %s28
      %s48 = sphi 0, %s48
      %s50 = sphi 0, %s48
      %s51 = sphi 0, %s50
      %s65 = sphi 0, %s51
      %s69 = sphi 0, %s69
      %s71 = sphi 0, %s69
      %s72 = sphi 0, %s71
      %s86 = sphi 0, %s72
    $region4: #{tpu_custom_call.1} parent=1 // loop_header_branch
      %17 = sbr.rel (%p15) target = $region8
    $region5: #{tpu_custom_call.1} parent=1 // loop_body
      %s19 = ssub.s32 %s14, 1
      %s20 = ssub.s32 %s14, 2
      %s21 = sadd.s32 %s14, 1
      %s22 = ssub.s32 %s14, %s21
      %p23 = scmp.eq.s32.totalorder %s22, 0
      %s25 = sadd.s32 %s24, 1
      %s26 = scalar_select %p23, %s24, %s25
      %p29 = pneg %p23
      %p30 = scmp.eq.s32.totalorder %s14, 3
      %p31 = por %p29, %p30
      %p32 = scmp.ne.s32.totalorder %s24, %s27
      %p33 = scmp.eq.s32.totalorder %s14, 0
      %p34 = por %p32, %p33
      %p35 = scmp.ne.s32.totalorder %s24, %s27
      %p36 = scmp.eq.s32.totalorder %s19, 3
      %p37 = por %p35, %p36
      %p38 = scmp.ne.s32.totalorder %s27, %s28
      %p39 = scmp.eq.s32.totalorder %s19, 0
      %p40 = por %p38, %p39
      %p41 = scmp.ne.s32.totalorder %s27, %s28
      %p42 = scmp.eq.s32.totalorder %s20, 3
      %p43 = por %p41, %p42
      %p45 = scmp.ne.s32.totalorder %s28, %s44
      %p46 = scmp.eq.s32.totalorder %s20, 0
      %p47 = por %p45, %p46
      %s49 = sadd.s32 %s48, 1
      %p52 = scmp.eq.s32.totalorder %s14, 3
      %p53 = scmp.ne.s32.totalorder %s48, %s50
      %p54 = scmp.eq.s32.totalorder %s14, 0
      %p55 = por %p53, %p54
      %p56 = scmp.ne.s32.totalorder %s48, %s50
      %p57 = scmp.eq.s32.totalorder %s19, 3
      %p58 = por %p56, %p57
      %p59 = scmp.ne.s32.totalorder %s50, %s51
      %p60 = scmp.eq.s32.totalorder %s19, 0
      %p61 = por %p59, %p60
      %p62 = scmp.ne.s32.totalorder %s50, %s51
      %p63 = scmp.eq.s32.totalorder %s20, 3
      %p64 = por %p62, %p63
      %p66 = scmp.ne.s32.totalorder %s51, %s65
      %p67 = scmp.eq.s32.totalorder %s20, 0
      %p68 = por %p66, %p67
      %s70 = sadd.s32 %s69, 1
      %p73 = scmp.eq.s32.totalorder %s14, 3
      %p74 = scmp.ne.s32.totalorder %s69, %s71
      %p75 = scmp.eq.s32.totalorder %s14, 0
      %p76 = por %p74, %p75
      %p77 = scmp.ne.s32.totalorder %s69, %s71
      %p78 = scmp.eq.s32.totalorder %s19, 3
      %p79 = por %p77, %p78
      %p80 = scmp.ne.s32.totalorder %s71, %s72
      %p81 = scmp.eq.s32.totalorder %s19, 0
      %p82 = por %p80, %p81
      %p83 = scmp.ne.s32.totalorder %s71, %s72
      %p84 = scmp.eq.s32.totalorder %s20, 3
      %p85 = por %p83, %p84
      %p87 = scmp.ne.s32.totalorder %s72, %s86
      %p88 = scmp.eq.s32.totalorder %s20, 0
      %p89 = por %p87, %p88
      %p90 = scmp.le.s32.totalorder 1, %s14
      %p91 = scmp.lt.s32.totalorder %s14, 5
      %p92 = pnand %p90, %p91
      %p93 = pneg %p92
      // Predicated region
      $region9: #{tpu_custom_call.1} parent=5 // pred_check
        _
      $region10: #{tpu_custom_call.1} parent=5 // pred_check_branch
        %95 = sbr.rel (%p92) target = $region12
      $region11: #{tpu_custom_call.1} parent=5 // pred_region
        %s96 = ssub.s32 %s14, 1
      $region12: #{tpu_custom_call.1} parent=5 // pred_fallthru
        _
      %p97 = scmp.lt.s32.totalorder %s14, 4
      // Predicated region
      $region13: #{tpu_custom_call.1} parent=5 // pred_check
        %p98 = pneg %p97
      $region14: #{tpu_custom_call.1} parent=5 // pred_check_branch
        %100 = sbr.rel (%p98) target = $region16
      $region15: #{tpu_custom_call.1} parent=5 // pred_region
        // Predicated region
        $region17: #{tpu_custom_call.1} parent=15 // pred_check
          %p101 = pneg %p34
        $region18: #{tpu_custom_call.1} parent=15 // pred_check_branch
          %103 = sbr.rel (%p101) target = $region20
        $region19: #{tpu_custom_call.1} parent=15 // pred_region
          %s104 = sand.u32 %s24, 1
          %s105 = scalar_lea.sflag [#allocation3], %s104
          %s106 = sand.u32 %s24, 1
          %s107 = smul.addr %s106, 64
          %s108 = scalar_lea.vmem [#allocation2], %s107
          %s109 = smul.u32 8, %s14
          %s111 = ssub.s32 1024, 1024
          %112 = vsyncadd %s105, %s111
          %s113 = smul.addr %s109, 128
          %s114 = scalar_lea.hbm %s0, %s113
          %s115 = sshll.u32 %s108, 4
          %s116 = int_to_ptr.vmem [resolvable:$true] %s115
          %121 = dma.hbm_to_vmem [thread:$0]  %s114, 1024, %s116, %s105, 128, 128, 8
        $region20: #{tpu_custom_call.1} parent=15 // pred_fallthru
          _
      $region16: #{tpu_custom_call.1} parent=5 // pred_fallthru
        _
      %p122 = scmp.le.s32.totalorder 1, %s14
      %p123 = scmp.lt.s32.totalorder %s14, 5
      %p124 = pnand %p122, %p123
      %p125 = pneg %p124
      // Predicated region
      $region21: #{tpu_custom_call.1} parent=5 // pred_check
        _
      $region22: #{tpu_custom_call.1} parent=5 // pred_check_branch
        %127 = sbr.rel (%p124) target = $region24
      $region23: #{tpu_custom_call.1} parent=5 // pred_region
        %s128 = ssub.s32 %s14, 1
        %s129 = sand.u32 %s27, 1
        %s130 = scalar_lea.sflag [#allocation3], %s129
        %s131 = sand.u32 %s27, 1
        %s132 = smul.addr %s131, 64
        %s133 = scalar_lea.vmem [#allocation2], %s132
        // Predicated region
        $region25: #{tpu_custom_call.1} parent=23 // pred_check
          %p134 = pneg %p40
        $region26: #{tpu_custom_call.1} parent=23 // pred_check_branch
          %136 = sbr.rel (%p134) target = $region28
        $region27: #{tpu_custom_call.1} parent=23 // pred_region
          %137 = dma.done %s130, 1024
        $region28: #{tpu_custom_call.1} parent=23 // pred_fallthru
          _
        %s138 = sand.u32 %s27, 1
        %s139 = scalar_lea.sflag [#allocation3], %s138
        %s140 = sand.u32 %s27, 1
        %s141 = smul.addr %s140, 64
        %s142 = scalar_lea.vmem [#allocation2], %s141
        %p143 = pneg %p40
        %p144 = pneg %p37
        %p145 = pneg %p61
        %p146 = pneg %p58
        %p147 = pneg %p82
        %p148 = pneg %p79
        %s149 = smul.u32 8, %s19
        %p150 = scmp.eq.s32.totalorder %s19, 0
        // Predicated region
        $region29: #{tpu_custom_call.1} parent=23 // pred_check
          %p151 = pneg %p150
        $region30: #{tpu_custom_call.1} parent=23 // pred_check_branch
          %153 = sbr.rel (%p151) target = $region32
        $region31: #{tpu_custom_call.1} parent=23 // pred_region
          %154 = vst [vmem:[#allocation5] sm:$0x1] 0.0
          %155 = vst [vmem:[#allocation6] sm:$0x1] 0.0
        $region32: #{tpu_custom_call.1} parent=23 // pred_fallthru
          _
        %v156 = vld [vmem:[%s133] sm:$0xff]
        %v157 = vld [vmem:[%s133 + $0x8] sm:$0xff]
        %v158 = vld [vmem:[%s133 + $0x10] sm:$0xff]
        %v159 = vld [vmem:[%s133 + $0x18] sm:$0xff]
        %v160 = vld [vmem:[%s133 + $0x20] sm:$0xff]
        %v161 = vld [vmem:[%s133 + $0x28] sm:$0xff]
        %v162 = vld [vmem:[%s133 + $0x30] sm:$0xff]
        %v163 = vld [vmem:[%s133 + $0x38] sm:$0xff]
        %v164 = vld [vmem:[#allocation5] sm:$0x1]
        %v165 = vadd.f32 %v156, %v157
        %v166 = vadd.f32 %v165, %v158
        %v167 = vadd.f32 %v166, %v159
        %v168 = vadd.f32 %v167, %v160
        %v169 = vadd.f32 %v168, %v161
        %v170 = vadd.f32 %v169, %v162
        %v171 = vadd.f32 %v170, %v163
        %v172 = vrot.slane %v171, 4
        %v173 = vadd.f32 %v171, %v172
        %v174 = vrot.slane %v173, 2
        %v175 = vadd.f32 %v173, %v174
        %v176 = vrot.slane %v175, 1
        %v177 = vadd.f32 %v175, %v176
        %v178 = vadd.f32 %v164, %v177
        %179 = vst [vmem:[#allocation5] sm:$0x1] %v178
        %v180 = vld [vmem:[#allocation6] sm:$0x1]
        %v181 = vmul.f32 %v156, %v156
        %v182 = vmul.f32 %v157, %v157
        %v183 = vmul.f32 %v158, %v158
        %v184 = vmul.f32 %v159, %v159
        %v185 = vmul.f32 %v160, %v160
        %v186 = vmul.f32 %v161, %v161
        %v187 = vmul.f32 %v162, %v162
        %v188 = vmul.f32 %v163, %v163
        %v189 = vadd.f32 %v181, %v182
        %v190 = vadd.f32 %v189, %v183
        %v191 = vadd.f32 %v190, %v184
        %v192 = vadd.f32 %v191, %v185
        %v193 = vadd.f32 %v192, %v186
        %v194 = vadd.f32 %v193, %v187
        %v195 = vadd.f32 %v194, %v188
        %v196 = vrot.slane %v195, 4
        %v197 = vadd.f32 %v195, %v196
        %v198 = vrot.slane %v197, 2
        %v199 = vadd.f32 %v197, %v198
        %v200 = vrot.slane %v199, 1
        %v201 = vadd.f32 %v199, %v200
        %v202 = vadd.f32 %v180, %v201
        %203 = vst [vmem:[#allocation6] sm:$0x1] %v202
        %p204 = scmp.eq.s32.totalorder %s19, 3
        // Predicated region
        $region33: #{tpu_custom_call.1} parent=23 // pred_check
          %p205 = pneg %p204
        $region34: #{tpu_custom_call.1} parent=23 // pred_check_branch
          %207 = sbr.rel (%p205) target = $region36
        $region35: #{tpu_custom_call.1} parent=23 // pred_region
          %v208 = vld [vmem:[#allocation5] sm:$0x1]
          %v209 = vmul.f32 %v208, 0.00390625
          %v210 = vld [vmem:[#allocation6] sm:$0x1]
          %v211 = vmul.f32 %v210, 0.00390625
          %v212 = vmul.f32 %v209, %v209
          %v213 = vsub.f32 %v211, %v212
          %v214 = vmax.f32 %v213, 0.0
          %215 = vst [vmem:[#allocation5] sm:$0x1] %v209
          %216 = vst [vmem:[#allocation6] sm:$0x1] %v214
        $region36: #{tpu_custom_call.1} parent=23 // pred_fallthru
          _
        // Predicated region
        $region37: #{tpu_custom_call.1} parent=23 // pred_check
          %p217 = pneg %p58
        $region38: #{tpu_custom_call.1} parent=23 // pred_check_branch
          %219 = sbr.rel (%p217) target = $region40
        $region39: #{tpu_custom_call.1} parent=23 // pred_region
          %s221 = ssub.s32 16, 16
          %222 = vsyncadd [#allocation4], %s221
          %s224 = sshll.u32 [#allocation5], 4
          %s225 = int_to_ptr.vmem [resolvable:$true] %s224
          %227 = dma.vmem_to_hbm [thread:$0]  %s225, 16, %s1, [#allocation4]
        $region40: #{tpu_custom_call.1} parent=23 // pred_fallthru
          _
        // Predicated region
        $region41: #{tpu_custom_call.1} parent=23 // pred_check
          %p228 = pneg %p79
        $region42: #{tpu_custom_call.1} parent=23 // pred_check_branch
          %230 = sbr.rel (%p228) target = $region44
        $region43: #{tpu_custom_call.1} parent=23 // pred_region
          %s232 = ssub.s32 16, 16
          %233 = vsyncadd [#allocation7], %s232
          %s235 = sshll.u32 [#allocation6], 4
          %s236 = int_to_ptr.vmem [resolvable:$true] %s235
          %238 = dma.vmem_to_hbm [thread:$0]  %s236, 16, %s2, [#allocation7]
        $region44: #{tpu_custom_call.1} parent=23 // pred_fallthru
          _
        // Predicated region
        $region45: #{tpu_custom_call.1} parent=23 // pred_check
          %p239 = pneg %p58
        $region46: #{tpu_custom_call.1} parent=23 // pred_check_branch
          %241 = sbr.rel (%p239) target = $region48
        $region47: #{tpu_custom_call.1} parent=23 // pred_region
          %242 = dma.done [#allocation4], 16
        $region48: #{tpu_custom_call.1} parent=23 // pred_fallthru
          _
        // Predicated region
        $region49: #{tpu_custom_call.1} parent=23 // pred_check
          %p243 = pneg %p79
        $region50: #{tpu_custom_call.1} parent=23 // pred_check_branch
          %245 = sbr.rel (%p243) target = $region52
        $region51: #{tpu_custom_call.1} parent=23 // pred_region
          %246 = dma.done [#allocation7], 16
        $region52: #{tpu_custom_call.1} parent=23 // pred_fallthru
          _
      $region24: #{tpu_custom_call.1} parent=5 // pred_fallthru
        _
      %p247 = scmp.le.s32.totalorder 2, %s14
      // Predicated region
      $region53: #{tpu_custom_call.1} parent=5 // pred_check
        %p248 = pneg %p247
      $region54: #{tpu_custom_call.1} parent=5 // pred_check_branch
        %250 = sbr.rel (%p248) target = $region56
      $region55: #{tpu_custom_call.1} parent=5 // pred_region
        %s251 = ssub.s32 %s14, 2
      $region56: #{tpu_custom_call.1} parent=5 // pred_fallthru
        _
    $region6: #{tpu_custom_call.1} parent=1 // loop_footer
      %s18 = sadd.s32 1, %s14
    $region7: #{tpu_custom_call.1} parent=1 // loop_footer_branch
      %13 = sbr.rel target = $region3
    $region8: #{tpu_custom_call.1} parent=1 // loop_exit
      _
    %252 = vsyncpa [#allocation3], 1
    %s253 = scalar_lea.sflag [#allocation3], 1
    %254 = vsyncpa %s253, 1
    %255 = vsyncpa [#allocation4], 1
    %s256 = scalar_lea.sflag [#allocation4], 1
    %257 = vsyncpa %s256, 1
    %258 = vsyncpa [#allocation7], 1

</llo_original>
